<compile_context>
chip_gen: v7x
topology: tpu7x:2x2x1
jax: 0.10.0
libtpu: 0.0.40
codegen_flags: <defaults>
</compile_context>

<pallas_src>
import functools

import jax
import jax.numpy as jnp
from jax.experimental import pallas as pl
from jax.experimental.pallas import tpu as pltpu


def ffn_kernel(x_ref, w1_ref, b1_ref, w2_ref, b2_ref, o_ref, acc_ref):
    # Grid: (i over M tiles [parallel], j over d_ff tiles [arbitrary, last]).
    j = pl.program_id(1)

    @pl.when(j == 0)
    def _():
        acc_ref[...] = jnp.zeros_like(acc_ref)

    # Layer1 tile: [tm, d_model_p](bf16) @ [d_model_p, tf](bf16) -> f32.
    h = jnp.dot(x_ref[...], w1_ref[...], preferred_element_type=jnp.float32)
    h = h + b1_ref[...]            # (1, tf) broadcasts over rows (f32)
    h = jnp.maximum(h, 0.0)        # ReLU
    # Dropout (eval mode) == identity.
    # TODO(synk): training-mode dropout (prng mask + 1/(1-p) scale) not implemented.

    # Layer2 partial: [tm, tf](bf16) @ [tf, d_model_p](bf16), accumulated over d_ff.
    acc_ref[...] += jnp.dot(h.astype(jnp.bfloat16), w2_ref[...],
                            preferred_element_type=jnp.float32)

    @pl.when(j == pl.num_programs(1) - 1)
    def _():
        o_ref[...] = (acc_ref[...] + b2_ref[...]).astype(o_ref.dtype)


def _round_up(x, m):
    return ((x + m - 1) // m) * m


def _pad2d(a, rows, cols, dtype):
    """Cast + zero-pad a 2-D array up to (rows, cols); no-op pads are skipped."""
    a = a.astype(dtype)
    pr, pc = rows - a.shape[0], cols - a.shape[1]
    if pr or pc:
        a = jnp.pad(a, ((0, pr), (0, pc)))
    return a


def _pick_tf(d_ff, d_model_p, tm_e, out_itemsize, budget_bytes):
    """Largest d_ff tile (multiple of 128) whose working set fits the budget."""
    tf = _round_up(d_ff, 128)
    while True:
        est = (2 * tm_e * d_model_p * 2            # x tiles (bf16, double-buffered)
               + 2 * d_model_p * tf * 2            # W1 tiles (bf16)
               + 2 * tf * d_model_p * 2            # W2 tiles (bf16)
               + 2 * tm_e * d_model_p * out_itemsize   # out tiles
               + tm_e * d_model_p * 4              # f32 accumulator scratch
               + tm_e * tf * 4                     # layer-1 intermediate headroom
               + 4 * (tf + d_model_p) * 4)         # biases
        if est <= budget_bytes or tf <= 512:
            return tf, est
        tf = max(512, _round_up(tf // 2, 128))


@functools.partial(jax.jit, static_argnames=("tm", "tf"))
def feed_forward(x, w1, b1, w2, b2, *, tm=256, tf=None):
    """Fused eval-mode FFN.

    x: [..., d_model]; w1: [d_model, d_ff]; b1: [d_ff] or [1, d_ff];
    w2: [d_ff, d_model]; b2: [d_model] or [1, d_model].
    tf=None -> auto (full d_ff kept VMEM-resident when it fits).
    """
    assert tm % 8 == 0, "tm must be a multiple of 8 (sublane)"

    orig_shape = x.shape
    out_dtype = x.dtype
    out_itemsize = jnp.dtype(out_dtype).itemsize
    d_model = orig_shape[-1]
    d_ff = w1.shape[1]

    x2d = x.reshape(-1, d_model)
    M = x2d.shape[0]

    # ---- TPU-friendly padded shapes / effective tile sizes ----
    d_model_p = _round_up(d_model, 128)          # lane-dense output columns
    tm_e = min(tm, _round_up(M, 8))              # don't over-pad tiny inputs
    M_p = _round_up(M, tm_e)

    budget = 40 * 1024 * 1024
    if tf is None:
        tf_e, vmem_est = _pick_tf(d_ff, d_model_p, tm_e, out_itemsize, budget)
    else:
        assert tf % 128 == 0, "tf must be a multiple of 128 (lane)"
        tf_e = min(tf, _round_up(d_ff, 128))
        _, vmem_est = _pick_tf(tf_e, d_model_p, tm_e, out_itemsize, budget)
    d_ff_p = _round_up(d_ff, tf_e)

    # bf16 MXU operands (halves HBM/VMEM traffic); biases stay f32.
    xp = _pad2d(x2d, M_p, d_model_p, jnp.bfloat16)
    w1p = _pad2d(w1, d_model_p, d_ff_p, jnp.bfloat16)
    w2p = _pad2d(w2, d_ff_p, d_model_p, jnp.bfloat16)
    b1p = _pad2d(b1.reshape(1, -1), 1, d_ff_p, jnp.float32)
    b2p = _pad2d(b2.reshape(1, -1), 1, d_model_p, jnp.float32)

    grid = (M_p // tm_e, d_ff_p // tf_e)

    # 48 MiB cap keeps the tiling safe on v7x's 64 MiB per-TC VMEM.
    vmem_limit = int(min(max(int(1.5 * vmem_est), 32 * 1024 * 1024),
                         48 * 1024 * 1024))

    out_bytes = M_p * d_model_p * out_itemsize
    cost = pl.CostEstimate(
        flops=2 * 2 * M_p * d_model_p * d_ff_p,
        transcendentals=0,
        bytes_accessed=(xp.size * 2 + w1p.size * 2 + w2p.size * 2
                        + b1p.size * 4 + b2p.size * 4 + out_bytes),
    )

    out = pl.pallas_call(
        ffn_kernel,
        out_shape=jax.ShapeDtypeStruct((M_p, d_model_p), out_dtype),
        grid=grid,
        in_specs=[
            pl.BlockSpec((tm_e, d_model_p), lambda i, j: (i, 0)),   # x tile
            pl.BlockSpec((d_model_p, tf_e), lambda i, j: (0, j)),   # W1 col block
            pl.BlockSpec((1, tf_e), lambda i, j: (0, j)),           # b1 block
            pl.BlockSpec((tf_e, d_model_p), lambda i, j: (j, 0)),   # W2 row block
            pl.BlockSpec((1, d_model_p), lambda i, j: (0, 0)),      # b2
        ],
        out_specs=pl.BlockSpec((tm_e, d_model_p), lambda i, j: (i, 0)),
        scratch_shapes=[pltpu.VMEM((tm_e, d_model_p), jnp.float32)],
        compiler_params=pltpu.CompilerParams(
            dimension_semantics=("parallel", "arbitrary"),
            vmem_limit_bytes=vmem_limit,
        ),
        cost_estimate=cost,
    )(xp, w1p, b1p, w2p, b2p)

    if M_p != M or d_model_p != d_model:
        out = out[:M, :d_model]
    return out.reshape(orig_shape)


def init_params(key, d_model, d_ff, dtype=jnp.float32):
    """Deterministic init mimicking nn.Linear's uniform(-1/sqrt(fan_in), +)."""
    k1, k2, k3, k4 = jax.random.split(key, 4)
    lim1 = 1.0 / (d_model ** 0.5)
    lim2 = 1.0 / (d_ff ** 0.5)
    # Stored pre-transposed as [in, out] for the kernel.
    w1 = jax.random.uniform(k1, (d_model, d_ff), dtype, -lim1, lim1)
    b1 = jax.random.uniform(k2, (1, d_ff), dtype, -lim1, lim1)
    w2 = jax.random.uniform(k3, (d_ff, d_model), dtype, -lim2, lim2)
    b2 = jax.random.uniform(k4, (1, d_model), dtype, -lim2, lim2)
    return w1, b1, w2, b2


if __name__ == "__main__":
    # Small shapes: batch=2, seq=8, d_model=32, d_ff=256
    batch, seq, d_model, d_ff = 2, 8, 32, 256
    dropout_p = 0.1  # eval mode -> identity

    key = jax.random.PRNGKey(0)
    kx, kp = jax.random.split(key)
    x = jax.random.normal(kx, (batch, seq, d_model), jnp.float32)
    w1, b1, w2, b2 = init_params(kp, d_model, d_ff)

    # Pure-JAX reference with matching bf16-operand / f32-accumulate numerics.
    xb = x.reshape(-1, d_model).astype(jnp.bfloat16)
    h = jnp.dot(xb, w1.astype(jnp.bfloat16),
                preferred_element_type=jnp.float32) + b1.reshape(-1)
    h = jnp.maximum(h, 0.0)
    ref = jnp.dot(h.astype(jnp.bfloat16), w2.astype(jnp.bfloat16),
                  preferred_element_type=jnp.float32) + b2.reshape(-1)
    ref = ref.reshape(x.shape)

    # 1) Blocked-d_ff path: tf=128 so d_ff=256 exercises the accumulator loop.
    y = feed_forward(x, w1, b1, w2, b2, tm=256, tf=128)
    y = jax.block_until_ready(y)
    assert y.shape == x.shape
    assert jnp.allclose(y, ref, atol=1e-2, rtol=1e-2), "mismatch (blocked d_ff)"

    # 2) Auto-tf path: full d_ff resident in VMEM (single j step).
    y2 = feed_forward(x, w1, b1, w2, b2)
    y2 = jax.block_until_ready(y2)
    assert jnp.allclose(y2, ref, atol=1e-2, rtol=1e-2), "mismatch (resident d_ff)"

    print("KERNEL_OK")
</pallas_src>

<mosaic_0001>
module attributes {stable_mosaic.version = 11 : i64} {
  func.func @ffn_kernel(%arg0: i32, %arg1: i32, %arg2: memref<16x128xbf16, #tpu.memory_space<vmem>>, %arg3: memref<128x128xbf16, #tpu.memory_space<vmem>>, %arg4: memref<1x128xf32, #tpu.memory_space<vmem>>, %arg5: memref<128x128xbf16, #tpu.memory_space<vmem>>, %arg6: memref<1x128xf32, #tpu.memory_space<vmem>>, %arg7: memref<16x128xf32, #tpu.memory_space<vmem>>, %arg8: memref<16x128xf32, #tpu.memory_space<vmem>>) attributes {dimension_semantics = [#tpu.dimension_semantics<parallel>, #tpu.dimension_semantics<arbitrary>], iteration_bounds = array<i64: 1, 2>, scalar_prefetch = 0 : i64, scratch_operands = 1 : i64, tpu.core_type = #tpu.core_type<tc>, window_params = [{transform_indices = @transform_0, window_bounds = array<i64: 16, 128>}, {transform_indices = @transform_1, window_bounds = array<i64: 128, 128>}, {transform_indices = @transform_2, window_bounds = array<i64: 1, 128>}, {transform_indices = @transform_3, window_bounds = array<i64: 128, 128>}, {pipeline_mode = #tpu.pipeline_mode<synchronous>, transform_indices = @transform_4, window_bounds = array<i64: 1, 128>}, {transform_indices = @transform_5, window_bounds = array<i64: 16, 128>}]} {
    %c0_i32 = arith.constant 0 : i32
    %0 = arith.cmpi eq, %arg1, %c0_i32 : i32
    %1 = arith.extui %0 : i1 to i32
    %c0_i32_0 = arith.constant 0 : i32
    %2 = arith.cmpi ne, %1, %c0_i32_0 : i32
    scf.if %2 {
      %cst_15 = arith.constant 0.000000e+00 : f32
      %20 = vector.broadcast %cst_15 : f32 to vector<16x128xf32>
      %c0_16 = arith.constant 0 : index
      %c0_17 = arith.constant 0 : index
      %21 = vector.load %arg8[%c0_16, %c0_17] : memref<16x128xf32, #tpu.memory_space<vmem>>, vector<16x128xf32>
      tpu.vector_store %arg8[%c0_16, %c0_17], %20 {strides = array<i32>} : memref<16x128xf32, #tpu.memory_space<vmem>>, vector<16x128xf32>,
    } else {
    }
    %c0 = arith.constant 0 : index
    %c0_1 = arith.constant 0 : index
    %3 = vector.load %arg2[%c0, %c0_1] : memref<16x128xbf16, #tpu.memory_space<vmem>>, vector<16x128xbf16>
    %c0_2 = arith.constant 0 : index
    %c0_3 = arith.constant 0 : index
    %4 = vector.load %arg3[%c0_2, %c0_3] : memref<128x128xbf16, #tpu.memory_space<vmem>>, vector<128x128xbf16>
    %cst = arith.constant dense<0.000000e+00> : vector<16x128xf32>
    %5 = tpu.matmul %3, %4, %cst {dimension_numbers = #tpu.dot_dimension_numbers<[1], [0], [0], [1], [0, 0, 1, 1], [], []>} : vector<16x128xbf16>, vector<128x128xbf16>, vector<16x128xf32> -> vector<16x128xf32>
    %c0_4 = arith.constant 0 : index
    %c0_5 = arith.constant 0 : index
    %6 = vector.load %arg4[%c0_4, %c0_5] : memref<1x128xf32, #tpu.memory_space<vmem>>, vector<1x128xf32>
    %7 = vector.broadcast %6 : vector<1x128xf32> to vector<16x128xf32>
    %8 = arith.addf %5, %7 : vector<16x128xf32>
    %cst_6 = arith.constant 0.000000e+00 : f32
    %9 = vector.broadcast %cst_6 : f32 to vector<16x128xf32>
    %10 = arith.maximumf %8, %9 : vector<16x128xf32>
    %c0_7 = arith.constant 0 : index
    %c0_8 = arith.constant 0 : index
    %11 = vector.load %arg8[%c0_7, %c0_8] : memref<16x128xf32, #tpu.memory_space<vmem>>, vector<16x128xf32>
    %12 = arith.truncf %10 : vector<16x128xf32> to vector<16x128xbf16>
    %c0_9 = arith.constant 0 : index
    %c0_10 = arith.constant 0 : index
    %13 = vector.load %arg5[%c0_9, %c0_10] : memref<128x128xbf16, #tpu.memory_space<vmem>>, vector<128x128xbf16>
    %cst_11 = arith.constant dense<0.000000e+00> : vector<16x128xf32>
    %14 = tpu.matmul %12, %13, %cst_11 {dimension_numbers = #tpu.dot_dimension_numbers<[1], [0], [0], [1], [0, 0, 1, 1], [], []>} : vector<16x128xbf16>, vector<128x128xbf16>, vector<16x128xf32> -> vector<16x128xf32>
    %15 = arith.addf %11, %14 : vector<16x128xf32>
    %c0_12 = arith.constant 0 : index
    %c0_13 = arith.constant 0 : index
    %16 = vector.load %arg8[%c0_12, %c0_13] : memref<16x128xf32, #tpu.memory_space<vmem>>, vector<16x128xf32>
    tpu.vector_store %arg8[%c0_12, %c0_13], %15 {strides = array<i32>} : memref<16x128xf32, #tpu.memory_space<vmem>>, vector<16x128xf32>,
    %c1_i32 = arith.constant 1 : i32
    %17 = arith.cmpi eq, %arg1, %c1_i32 : i32
    %18 = arith.extui %17 : i1 to i32
    %c0_i32_14 = arith.constant 0 : i32
    %19 = arith.cmpi ne, %18, %c0_i32_14 : i32
    scf.if %19 {
      %c0_15 = arith.constant 0 : index
      %c0_16 = arith.constant 0 : index
      %20 = vector.load %arg8[%c0_15, %c0_16] : memref<16x128xf32, #tpu.memory_space<vmem>>, vector<16x128xf32>
      %c0_17 = arith.constant 0 : index
      %c0_18 = arith.constant 0 : index
      %21 = vector.load %arg6[%c0_17, %c0_18] : memref<1x128xf32, #tpu.memory_space<vmem>>, vector<1x128xf32>
      %22 = vector.broadcast %21 : vector<1x128xf32> to vector<16x128xf32>
      %23 = arith.addf %20, %22 : vector<16x128xf32>
      %c0_19 = arith.constant 0 : index
      %c0_20 = arith.constant 0 : index
      %24 = vector.load %arg7[%c0_19, %c0_20] : memref<16x128xf32, #tpu.memory_space<vmem>>, vector<16x128xf32>
      tpu.vector_store %arg7[%c0_19, %c0_20], %23 {strides = array<i32>} : memref<16x128xf32, #tpu.memory_space<vmem>>, vector<16x128xf32>,
    } else {
    }
    return
  }
  func.func @transform_0(%arg0: i32, %arg1: i32) -> (i32, i32) {
    %c0_i32 = arith.constant 0 : i32
    %c0_i32_0 = arith.constant 0 : i32
    return %arg0, %c0_i32 : i32, i32
  }
  func.func @transform_1(%arg0: i32, %arg1: i32) -> (i32, i32) {
    %c0_i32 = arith.constant 0 : i32
    %c0_i32_0 = arith.constant 0 : i32
    return %c0_i32, %arg1 : i32, i32
  }
  func.func @transform_2(%arg0: i32, %arg1: i32) -> (i32, i32) {
    %c0_i32 = arith.constant 0 : i32
    %c0_i32_0 = arith.constant 0 : i32
    return %c0_i32, %arg1 : i32, i32
  }
  func.func @transform_3(%arg0: i32, %arg1: i32) -> (i32, i32) {
    %c0_i32 = arith.constant 0 : i32
    %c0_i32_0 = arith.constant 0 : i32
    return %arg1, %c0_i32 : i32, i32
  }
  func.func @transform_4(%arg0: i32, %arg1: i32) -> (i32, i32) {
    %c0_i32 = arith.constant 0 : i32
    %c0_i32_0 = arith.constant 0 : i32
    %c0_i32_1 = arith.constant 0 : i32
    return %c0_i32, %c0_i32_0 : i32, i32
  }
  func.func @transform_5(%arg0: i32, %arg1: i32) -> (i32, i32) {
    %c0_i32 = arith.constant 0 : i32
    %c0_i32_0 = arith.constant 0 : i32
    return %arg0, %c0_i32 : i32, i32
  }
}

</mosaic_0001>

<llo_original>
// kernel: feed_forward.1
$region0: #{feed_forward.1}
  #allocation0 [shape = 'u32[]', space=smem, size = 0x4, offset = 0x4, fixed_abs, tag = 'smem constant byte address 0x4 - core index']
  #allocation1 [shape = 'u32[144,128]{1,0:T(1,128)}', space=vmem, size = 0x12000, scoped, tag = 'internal scratch']
  #allocation2 [shape = 'f32[16,128]{1,0:T(8,128)}', space=vmem, size = 0x2000, scoped, tag = 'scratch operand']
  %s0 = inlined_call_operand.vmem [shape: bf16[16,128], index: 0, kind: input, shape index: {}]
  %s1 = inlined_call_operand.vmem [shape: bf16[128,256], index: 1, kind: input, shape index: {}]
  %s2 = inlined_call_operand.vmem [shape: f32[1,256], index: 2, kind: input, shape index: {}]
  %s3 = inlined_call_operand.vmem [shape: bf16[256,128], index: 3, kind: input, shape index: {}]
  %s4 = inlined_call_operand.vmem [shape: f32[1,128], index: 4, kind: input, shape index: {}]
  %s5 = inlined_call_operand.vmem [shape: f32[16,128], index: 5, kind: output, shape index: {}]
  %s6 = sld [smem:[#allocation0]]
  $region102: #{feed_forward.1} parent=0
    _
  %s8 = ssub.s32 1, %s6
  %s9 = scalar_select 0, %s8, %s6
  $region1: #{feed_forward.1} parent=0
    #allocation3 [shape = 'u8[65536]{0}', space=vmem, size = 0x10000, scoped, tag = 'input window, operand 1']
    loop: start=0, step=1, limit=4
    $region2: #{feed_forward.1} parent=1 // loop_pre_header
      _
    $region3: #{feed_forward.1} parent=1 // loop_header
      %s11 = sphi 0, %s15
      %p12 = scmp.ge.s32.totalorder %s11, 4
      %s18 = sphi 0, %s30
      %s19 = sphi 0, %s26
      %s20 = sphi 0, %s18
      %s21 = sphi 0, %s19
      %s22 = sphi 0, %s20
      %s23 = sphi 0, %s21
      %s33 = sphi 0, %s35
      %s36 = sphi 0, %s33
      %s37 = sphi 0, %s36
      %s53 = sphi 0, %s37
      %s59 = sphi 0, %s61
      %s62 = sphi 0, %s59
      %s63 = sphi 0, %s62
      %s79 = sphi 0, %s63
      %s85 = sphi 0, %s87
      %s88 = sphi 0, %s85
      %s89 = sphi 0, %s88
      %s105 = sphi 0, %s89
      %s111 = sphi 0, %s113
      %s114 = sphi 0, %s111
      %s115 = sphi 0, %s114
      %s131 = sphi 0, %s115
      %s135 = sphi 0, %s135
      %s137 = sphi 0, %s135
      %s138 = sphi 0, %s137
      %s152 = sphi 0, %s138
      %s158 = sphi 0, %s160
      %s161 = sphi 0, %s158
      %s162 = sphi 0, %s161
      %s178 = sphi 0, %s162
    $region4: #{feed_forward.1} parent=1 // loop_header_branch
      %14 = sbr.rel (%p12) target = $region8
    $region5: #{feed_forward.1} parent=1 // loop_body
      %s16 = ssub.s32 %s11, 1
      %s17 = ssub.s32 %s11, 2
      %s24 = sadd.s32 1, %s19
      %p25 = scmp.ge.s32.totalorder %s24, 2
      %s26 = scalar_select %p25, 0, %s24
      %s27 = sadd.s32 1, %s18
      %s28 = scalar_select %p25, %s27, %s18
      %p29 = scmp.ge.s32.totalorder %s28, 1
      %s30 = scalar_select %p29, 0, %s28
      %s31 = ssub.s32 %s18, %s30
      %p32 = scmp.eq.s32.totalorder %s31, 0
      %s34 = sadd.s32 %s33, 1
      %s35 = scalar_select %p32, %s33, %s34
      %p38 = pneg %p32
      %p39 = scmp.eq.s32.totalorder %s11, 1
      %p40 = por %p38, %p39
      %p41 = scmp.ne.s32.totalorder %s33, %s36
      %p42 = scmp.eq.s32.totalorder %s11, 0
      %p43 = por %p41, %p42
      %p44 = scmp.ne.s32.totalorder %s33, %s36
      %p45 = scmp.eq.s32.totalorder %s16, 1
      %p46 = por %p44, %p45
      %p47 = scmp.ne.s32.totalorder %s36, %s37
      %p48 = scmp.eq.s32.totalorder %s16, 0
      %p49 = por %p47, %p48
      %p50 = scmp.ne.s32.totalorder %s36, %s37
      %p51 = scmp.eq.s32.totalorder %s17, 1
      %p52 = por %p50, %p51
      %p54 = scmp.ne.s32.totalorder %s37, %s53
      %p55 = scmp.eq.s32.totalorder %s17, 0
      %p56 = por %p54, %p55
      %s57 = ssub.s32 %s19, %s26
      %p58 = scmp.eq.s32.totalorder %s57, 0
      %s60 = sadd.s32 %s59, 1
      %s61 = scalar_select %p58, %s59, %s60
      %p64 = pneg %p58
      %p65 = scmp.eq.s32.totalorder %s11, 1
      %p66 = por %p64, %p65
      %p67 = scmp.ne.s32.totalorder %s59, %s62
      %p68 = scmp.eq.s32.totalorder %s11, 0
      %p69 = por %p67, %p68
      %p70 = scmp.ne.s32.totalorder %s59, %s62
      %p71 = scmp.eq.s32.totalorder %s16, 1
      %p72 = por %p70, %p71
      %p73 = scmp.ne.s32.totalorder %s62, %s63
      %p74 = scmp.eq.s32.totalorder %s16, 0
      %p75 = por %p73, %p74
      %p76 = scmp.ne.s32.totalorder %s62, %s63
      %p77 = scmp.eq.s32.totalorder %s17, 1
      %p78 = por %p76, %p77
      %p80 = scmp.ne.s32.totalorder %s63, %s79
      %p81 = scmp.eq.s32.totalorder %s17, 0
      %p82 = por %p80, %p81
      %s83 = ssub.s32 %s19, %s26
      %p84 = scmp.eq.s32.totalorder %s83, 0
      %s86 = sadd.s32 %s85, 1
      %s87 = scalar_select %p84, %s85, %s86
      %p90 = pneg %p84
      %p91 = scmp.eq.s32.totalorder %s11, 1
      %p92 = por %p90, %p91
      %p93 = scmp.ne.s32.totalorder %s85, %s88
      %p94 = scmp.eq.s32.totalorder %s11, 0
      %p95 = por %p93, %p94
      %p96 = scmp.ne.s32.totalorder %s85, %s88
      %p97 = scmp.eq.s32.totalorder %s16, 1
      %p98 = por %p96, %p97
      %p99 = scmp.ne.s32.totalorder %s88, %s89
      %p100 = scmp.eq.s32.totalorder %s16, 0
      %p101 = por %p99, %p100
      %p102 = scmp.ne.s32.totalorder %s88, %s89
      %p103 = scmp.eq.s32.totalorder %s17, 1
      %p104 = por %p102, %p103
      %p106 = scmp.ne.s32.totalorder %s89, %s105
      %p107 = scmp.eq.s32.totalorder %s17, 0
      %p108 = por %p106, %p107
      %s109 = ssub.s32 %s19, %s26
      %p110 = scmp.eq.s32.totalorder %s109, 0
      %s112 = sadd.s32 %s111, 1
      %s113 = scalar_select %p110, %s111, %s112
      %p116 = pneg %p110
      %p117 = scmp.eq.s32.totalorder %s11, 1
      %p118 = por %p116, %p117
      %p119 = scmp.ne.s32.totalorder %s111, %s114
      %p120 = scmp.eq.s32.totalorder %s11, 0
      %p121 = por %p119, %p120
      %p122 = scmp.ne.s32.totalorder %s111, %s114
      %p123 = scmp.eq.s32.totalorder %s16, 1
      %p124 = por %p122, %p123
      %p125 = scmp.ne.s32.totalorder %s114, %s115
      %p126 = scmp.eq.s32.totalorder %s16, 0
      %p127 = por %p125, %p126
      %p128 = scmp.ne.s32.totalorder %s114, %s115
      %p129 = scmp.eq.s32.totalorder %s17, 1
      %p130 = por %p128, %p129
      %p132 = scmp.ne.s32.totalorder %s115, %s131
      %p133 = scmp.eq.s32.totalorder %s17, 0
      %p134 = por %p132, %p133
      %s136 = sadd.s32 %s135, 1
      %p139 = scmp.eq.s32.totalorder %s11, 1
      %p140 = scmp.ne.s32.totalorder %s135, %s137
      %p141 = scmp.eq.s32.totalorder %s11, 0
      %p142 = por %p140, %p141
      %p143 = scmp.ne.s32.totalorder %s135, %s137
      %p144 = scmp.eq.s32.totalorder %s16, 1
      %p145 = por %p143, %p144
      %p146 = scmp.ne.s32.totalorder %s137, %s138
      %p147 = scmp.eq.s32.totalorder %s16, 0
      %p148 = por %p146, %p147
      %p149 = scmp.ne.s32.totalorder %s137, %s138
      %p150 = scmp.eq.s32.totalorder %s17, 1
      %p151 = por %p149, %p150
      %p153 = scmp.ne.s32.totalorder %s138, %s152
      %p154 = scmp.eq.s32.totalorder %s17, 0
      %p155 = por %p153, %p154
      %s156 = ssub.s32 %s18, %s30
      %p157 = scmp.eq.s32.totalorder %s156, 0
      %s159 = sadd.s32 %s158, 1
      %s160 = scalar_select %p157, %s158, %s159
      %p163 = pneg %p157
      %p164 = scmp.eq.s32.totalorder %s11, 1
      %p165 = por %p163, %p164
      %p166 = scmp.ne.s32.totalorder %s158, %s161
      %p167 = scmp.eq.s32.totalorder %s11, 0
      %p168 = por %p166, %p167
      %p169 = scmp.ne.s32.totalorder %s158, %s161
      %p170 = scmp.eq.s32.totalorder %s16, 1
      %p171 = por %p169, %p170
      %p172 = scmp.ne.s32.totalorder %s161, %s162
      %p173 = scmp.eq.s32.totalorder %s16, 0
      %p174 = por %p172, %p173
      %p175 = scmp.ne.s32.totalorder %s161, %s162
      %p176 = scmp.eq.s32.totalorder %s17, 1
      %p177 = por %p175, %p176
      %p179 = scmp.ne.s32.totalorder %s162, %s178
      %p180 = scmp.eq.s32.totalorder %s17, 0
      %p181 = por %p179, %p180
      %p182 = scmp.le.s32.totalorder 1, %s11
      %p183 = scmp.lt.s32.totalorder %s11, 3
      %p184 = pnand %p182, %p183
      %p185 = pneg %p184
      // Predicated region
      $region9: #{feed_forward.1} parent=5 // pred_check
        _
      $region10: #{feed_forward.1} parent=5 // pred_check_branch
        %187 = sbr.rel (%p184) target = $region12
      $region11: #{feed_forward.1} parent=5 // pred_region
        %s188 = ssub.s32 %s11, 1
        // Predicated region
        $region13: #{feed_forward.1} parent=11 // pred_check
          %p189 = pneg %p49
        $region14: #{feed_forward.1} parent=11 // pred_check_branch
          %191 = sbr.rel (%p189) target = $region16
        $region15: #{feed_forward.1} parent=11 // pred_region
          %s192 = smul.u32 2, %s20
          %p193 = scmp.lt.s32.totalorder %s192, 1
          %s194 = scalar_select %p193, %s192, 1
          %s195 = smul.addr %s194, 4
          %s196 = scalar_lea.vmem %s0, %s195
          %s197 = smul.u32 2, %s20
        $region16: #{feed_forward.1} parent=11 // pred_fallthru
          _
        // Predicated region
        $region17: #{feed_forward.1} parent=11 // pred_check
          %p198 = pneg %p148
        $region18: #{feed_forward.1} parent=11 // pred_check_branch
          %200 = sbr.rel (%p198) target = $region20
        $region19: #{feed_forward.1} parent=11 // pred_region
          _
        $region20: #{feed_forward.1} parent=11 // pred_fallthru
          _
      $region12: #{feed_forward.1} parent=5 // pred_fallthru
        _
      %p201 = scmp.lt.s32.totalorder %s11, 2
      // Predicated region
      $region21: #{feed_forward.1} parent=5 // pred_check
        %p202 = pneg %p201
      $region22: #{feed_forward.1} parent=5 // pred_check_branch
        %204 = sbr.rel (%p202) target = $region24
      $region23: #{feed_forward.1} parent=5 // pred_region
        // Predicated region
        $region25: #{feed_forward.1} parent=23 // pred_check
          %p205 = pneg %p69
        $region26: #{feed_forward.1} parent=23 // pred_check_branch
          %207 = sbr.rel (%p205) target = $region28
        $region27: #{feed_forward.1} parent=23 // pred_region
          %s208 = sand.u32 %s59, 1
          %s209 = sand.u32 %s59, 1
          %s210 = smul.addr %s209, 64
          %s211 = scalar_lea.vmem [#allocation3], %s210
          %s212 = smul.addr %s19, 4
          %s213 = scalar_lea.vmem %s1, %s212
          // Predicated region
          $region29: #{feed_forward.1} parent=27 // pred_check
            _
          $region30: #{feed_forward.1} parent=27 // pred_check_branch
            %215 = sbr.rel (0) target = $region32
          $region31: #{feed_forward.1} parent=27 // pred_region
            // Predicated region
            $region33: #{feed_forward.1} parent=31 // pred_check
              _
            $region34: #{feed_forward.1} parent=31 // pred_check_branch
              %217 = sbr.rel target = $region36
            $region35: #{feed_forward.1} parent=31 // pred_region
              // Predicated region
              $region48: #{feed_forward.1} parent=35 // pred_check
                _
              $region49: #{feed_forward.1} parent=35 // pred_check_branch
                %262 = sbr.rel (0) target = $region51
              $region50: #{feed_forward.1} parent=35 // pred_region
                loop: start=0, step=1, limit=1
                $region52: #{feed_forward.1} parent=50 // loop_pre_header
                  _
                $region53: #{feed_forward.1} parent=50 // loop_header
                  %s264 = sphi 0, %s268
                  %p265 = scmp.ge.s32.totalorder %s264, 1
                  %s269 = sphi %s213, %s213
                  %s270 = sphi %s211, %s211
                $region54: #{feed_forward.1} parent=50 // loop_header_branch
                  %267 = sbr.rel (%p265) target = $region58
                $region55: #{feed_forward.1} parent=50 // loop_body
                  _
                $region56: #{feed_forward.1} parent=50 // loop_footer
                  %s268 = sadd.s32 1, %s264
                $region57: #{feed_forward.1} parent=50 // loop_footer_branch
                  %263 = sbr.rel target = $region53
                $region58: #{feed_forward.1} parent=50 // loop_exit
                  _
                loop: start=0, step=1, limit=1
                $region59: #{feed_forward.1} parent=50 // loop_pre_header
                  _
                $region60: #{feed_forward.1} parent=50 // loop_header
                  %s273 = sphi 0, %s277
                  %p274 = scmp.ge.s32.totalorder %s273, 1
                  %s278 = sphi %s213, %s213
                  %s279 = sphi %s211, %s211
                $region61: #{feed_forward.1} parent=50 // loop_header_branch
                  %276 = sbr.rel (%p274) target = $region65
                $region62: #{feed_forward.1} parent=50 // loop_body
                  %v280 = vld [vmem:[%s278] sm:$0xf]
                  %281 = vst [vmem:[%s279] sm:$0xf] %v280
                  %v282 = vld [vmem:[%s278 + $0x8] sm:$0xf]
                  %283 = vst [vmem:[%s279 + $0x4] sm:$0xf] %v282
                  %v284 = vld [vmem:[%s278 + $0x10] sm:$0xf]
                  %285 = vst [vmem:[%s279 + $0x8] sm:$0xf] %v284
                  %v286 = vld [vmem:[%s278 + $0x18] sm:$0xf]
                  %287 = vst [vmem:[%s279 + $0xc] sm:$0xf] %v286
                  %v288 = vld [vmem:[%s278 + $0x20] sm:$0xf]
                  %289 = vst [vmem:[%s279 + $0x10] sm:$0xf] %v288
                  %v290 = vld [vmem:[%s278 + $0x28] sm:$0xf]
                  %291 = vst [vmem:[%s279 + $0x14] sm:$0xf] %v290
                  %v292 = vld [vmem:[%s278 + $0x30] sm:$0xf]
                  %293 = vst [vmem:[%s279 + $0x18] sm:$0xf] %v292
                  %v294 = vld [vmem:[%s278 + $0x38] sm:$0xf]
                  %295 = vst [vmem:[%s279 + $0x1c] sm:$0xf] %v294
                  %v296 = vld [vmem:[%s278 + $0x40] sm:$0xf]
                  %297 = vst [vmem:[%s279 + $0x20] sm:$0xf] %v296
                  %v298 = vld [vmem:[%s278 + $0x48] sm:$0xf]
                  %299 = vst [vmem:[%s279 + $0x24] sm:$0xf] %v298
                  %v300 = vld [vmem:[%s278 + $0x50] sm:$0xf]
                  %301 = vst [vmem:[%s279 + $0x28] sm:$0xf] %v300
                  %v302 = vld [vmem:[%s278 + $0x58] sm:$0xf]
                  %303 = vst [vmem:[%s279 + $0x2c] sm:$0xf] %v302
                  %v304 = vld [vmem:[%s278 + $0x60] sm:$0xf]
                  %305 = vst [vmem:[%s279 + $0x30] sm:$0xf] %v304
                  %v306 = vld [vmem:[%s278 + $0x68] sm:$0xf]
                  %307 = vst [vmem:[%s279 + $0x34] sm:$0xf] %v306
                  %v308 = vld [vmem:[%s278 + $0x70] sm:$0xf]
                  %309 = vst [vmem:[%s279 + $0x38] sm:$0xf] %v308
                  %v310 = vld [vmem:[%s278 + $0x78] sm:$0xf]
                  %311 = vst [vmem:[%s279 + $0x3c] sm:$0xf] %v310
                $region63: #{feed_forward.1} parent=50 // loop_footer
                  %s277 = sadd.s32 1, %s273
                $region64: #{feed_forward.1} parent=50 // loop_footer_branch
                  %272 = sbr.rel target = $region60
                $region65: #{feed_forward.1} parent=50 // loop_exit
                  _
              $region51: #{feed_forward.1} parent=35 // pred_fallthru
                _
            $region36: #{feed_forward.1} parent=31 // pred_fallthru
              _
            // Predicated region
            $region37: #{feed_forward.1} parent=31 // pred_check
              _
            $region38: #{feed_forward.1} parent=31 // pred_check_branch
              %219 = sbr.rel (0) target = $region40
            $region39: #{feed_forward.1} parent=31 // pred_region
              loop: start=0, step=1, limit=1
              $region41: #{feed_forward.1} parent=39 // loop_pre_header
                _
              $region42: #{feed_forward.1} parent=39 // loop_header
                %s222 = sphi 0, %s226
                %p223 = scmp.ge.s32.totalorder %s222, 1
                %s227 = sphi %s213, %s213
                %s228 = sphi %s211, %s211
              $region43: #{feed_forward.1} parent=39 // loop_header_branch
                %225 = sbr.rel (%p223) target = $region47
              $region44: #{feed_forward.1} parent=39 // loop_body
                %v229 = vld [vmem:[%s227] sm:$0xf]
                %230 = vst [vmem:[%s228] sm:$0xf] %v229
                %v231 = vld [vmem:[%s227 + $0x8] sm:$0xf]
                %232 = vst [vmem:[%s228 + $0x4] sm:$0xf] %v231
                %v233 = vld [vmem:[%s227 + $0x10] sm:$0xf]
                %234 = vst [vmem:[%s228 + $0x8] sm:$0xf] %v233
                %v235 = vld [vmem:[%s227 + $0x18] sm:$0xf]
                %236 = vst [vmem:[%s228 + $0xc] sm:$0xf] %v235
                %v237 = vld [vmem:[%s227 + $0x20] sm:$0xf]
                %238 = vst [vmem:[%s228 + $0x10] sm:$0xf] %v237
                %v239 = vld [vmem:[%s227 + $0x28] sm:$0xf]
                %240 = vst [vmem:[%s228 + $0x14] sm:$0xf] %v239
                %v241 = vld [vmem:[%s227 + $0x30] sm:$0xf]
                %242 = vst [vmem:[%s228 + $0x18] sm:$0xf] %v241
                %v243 = vld [vmem:[%s227 + $0x38] sm:$0xf]
                %244 = vst [vmem:[%s228 + $0x1c] sm:$0xf] %v243
                %v245 = vld [vmem:[%s227 + $0x40] sm:$0xf]
                %246 = vst [vmem:[%s228 + $0x20] sm:$0xf] %v245
                %v247 = vld [vmem:[%s227 + $0x48] sm:$0xf]
                %248 = vst [vmem:[%s228 + $0x24] sm:$0xf] %v247
                %v249 = vld [vmem:[%s227 + $0x50] sm:$0xf]
                %250 = vst [vmem:[%s228 + $0x28] sm:$0xf] %v249
                %v251 = vld [vmem:[%s227 + $0x58] sm:$0xf]
                %252 = vst [vmem:[%s228 + $0x2c] sm:$0xf] %v251
                %v253 = vld [vmem:[%s227 + $0x60] sm:$0xf]
                %254 = vst [vmem:[%s228 + $0x30] sm:$0xf] %v253
                %v255 = vld [vmem:[%s227 + $0x68] sm:$0xf]
                %256 = vst [vmem:[%s228 + $0x34] sm:$0xf] %v255
                %v257 = vld [vmem:[%s227 + $0x70] sm:$0xf]
                %258 = vst [vmem:[%s228 + $0x38] sm:$0xf] %v257
                %v259 = vld [vmem:[%s227 + $0x78] sm:$0xf]
                %260 = vst [vmem:[%s228 + $0x3c] sm:$0xf] %v259
              $region45: #{feed_forward.1} parent=39 // loop_footer
                %s226 = sadd.s32 1, %s222
              $region46: #{feed_forward.1} parent=39 // loop_footer_branch
                %221 = sbr.rel target = $region42
              $region47: #{feed_forward.1} parent=39 // loop_exit
                _
            $region40: #{feed_forward.1} parent=31 // pred_fallthru
              _
          $region32: #{feed_forward.1} parent=27 // pred_fallthru
            _
          %312 = vnop
        $region28: #{feed_forward.1} parent=23 // pred_fallthru
          _
        // Predicated region
        $region66: #{feed_forward.1} parent=23 // pred_check
          %p313 = pneg %p95
        $region67: #{feed_forward.1} parent=23 // pred_check_branch
          %315 = sbr.rel (%p313) target = $region69
        $region68: #{feed_forward.1} parent=23 // pred_region
          %p316 = scmp.lt.s32.totalorder %s19, 1
          %s317 = scalar_select %p316, %s19, 1
          %s318 = scalar_lea.vmem %s2, %s317
        $region69: #{feed_forward.1} parent=23 // pred_fallthru
          _
        // Predicated region
        $region70: #{feed_forward.1} parent=23 // pred_check
          %p319 = pneg %p121
        $region71: #{feed_forward.1} parent=23 // pred_check_branch
          %321 = sbr.rel (%p319) target = $region73
        $region72: #{feed_forward.1} parent=23 // pred_region
          %s322 = smul.u32 16, %s19
          %p323 = scmp.lt.s32.totalorder %s322, 31
          %s324 = scalar_select %p323, %s322, 31
          %s325 = smul.addr %s324, 4
          %s326 = scalar_lea.vmem %s3, %s325
          %s327 = smul.u32 16, %s19
        $region73: #{feed_forward.1} parent=23 // pred_fallthru
          _
      $region24: #{feed_forward.1} parent=5 // pred_fallthru
        _
      %p328 = scmp.le.s32.totalorder 1, %s11
      %p329 = scmp.lt.s32.totalorder %s11, 3
      %p330 = pnand %p328, %p329
      %p331 = pneg %p330
      // Predicated region
      $region74: #{feed_forward.1} parent=5 // pred_check
        _
      $region75: #{feed_forward.1} parent=5 // pred_check_branch
        %333 = sbr.rel (%p330) target = $region77
      $region76: #{feed_forward.1} parent=5 // pred_region
        %s334 = ssub.s32 %s11, 1
        %s335 = sand.u32 %s62, 1
        %s336 = sand.u32 %s62, 1
        %s337 = smul.addr %s336, 64
        %s338 = scalar_lea.vmem [#allocation3], %s337
        // Predicated region
        $region78: #{feed_forward.1} parent=76 // pred_check
          %p339 = pneg %p75
        $region79: #{feed_forward.1} parent=76 // pred_check_branch
          %341 = sbr.rel (%p339) target = $region81
        $region80: #{feed_forward.1} parent=76 // pred_region
          _
        $region81: #{feed_forward.1} parent=76 // pred_fallthru
          _
        %s342 = smul.u32 2, %s20
        %p343 = scmp.lt.s32.totalorder %s342, 1
        %s344 = scalar_select %p343, %s342, 1
        %s345 = smul.addr %s344, 4
        %s346 = scalar_lea.vmem %s0, %s345
        %p347 = pneg %p49
        %p348 = pneg %p46
        %s349 = sand.u32 %s62, 1
        %s350 = sand.u32 %s62, 1
        %s351 = smul.addr %s350, 64
        %s352 = scalar_lea.vmem [#allocation3], %s351
        %p353 = pneg %p75
        %p354 = pneg %p72
        %p355 = scmp.lt.s32.totalorder %s21, 1
        %s356 = scalar_select %p355, %s21, 1
        %s357 = scalar_lea.vmem %s2, %s356
        %p358 = pneg %p101
        %p359 = pneg %p98
        %s360 = smul.u32 16, %s21
        %p361 = scmp.lt.s32.totalorder %s360, 31
        %s362 = scalar_select %p361, %s360, 31
        %s363 = smul.addr %s362, 4
        %s364 = scalar_lea.vmem %s3, %s363
        %p365 = pneg %p127
        %p366 = pneg %p124
        %p367 = pneg %p148
        %p368 = pneg %p145
        %p369 = pneg %p174
        %p370 = pneg %p171
        %s371 = smul.u32 2, %s20
        %p372 = scmp.lt.s32.totalorder %s371, 1
        %s373 = scalar_select %p372, %s371, 1
        %s374 = smul.addr %s373, 8
        %s375 = scalar_lea.vmem %s5, %s374
        %s376 = smul.u32 2, %s20
        %p377 = scmp.lt.s32.totalorder %s376, 1
        %s378 = scalar_select %p377, %s376, 1
        %s379 = smul.addr %s378, 4
        %s380 = scalar_lea.vmem %s0, %s379
        %s381 = smul.u32 2, %s20
        %p382 = scmp.lt.s32.totalorder %s21, 1
        %s383 = scalar_select %p382, %s21, 1
        %s384 = scalar_lea.vmem %s2, %s383
        %s385 = smul.u32 16, %s21
        %p386 = scmp.lt.s32.totalorder %s385, 31
        %s387 = scalar_select %p386, %s385, 31
        %s388 = smul.addr %s387, 4
        %s389 = scalar_lea.vmem %s3, %s388
        %s390 = smul.u32 16, %s21
        %s391 = smul.u32 2, %s20
        %p392 = scmp.lt.s32.totalorder %s391, 1
        %s393 = scalar_select %p392, %s391, 1
        %s394 = smul.addr %s393, 8
        %s395 = scalar_lea.vmem %s5, %s394
        %s396 = smul.u32 2, %s20
        %p398 = scmp.eq.s32.totalorder %s21, 0
        // Predicated region
        $region82: #{feed_forward.1} parent=76 // pred_check
          %p399 = pneg %p398
        $region83: #{feed_forward.1} parent=76 // pred_check_branch
          %401 = sbr.rel (%p399) target = $region85
        $region84: #{feed_forward.1} parent=76 // pred_region
          %402 = vst [vmem:[#allocation2] sm:$0xff] 0.0
          %403 = vst [vmem:[#allocation2 + $0x8] sm:$0xff] 0.0
        $region85: #{feed_forward.1} parent=76 // pred_fallthru
          _
        %v404 = vld [vmem:[%s380] sm:$0xf]
        %v405 = vld [vmem:[%s380 + $0x4] sm:$0xf]
        %v406 = vld [vmem:[%s338] sm:$0xf]
        %v407 = vld [vmem:[%s338 + $0x4] sm:$0xf]
        %v408 = vld [vmem:[%s338 + $0x8] sm:$0xf]
        %v409 = vld [vmem:[%s338 + $0xc] sm:$0xf]
        %v410 = vld [vmem:[%s338 + $0x10] sm:$0xf]
        %v411 = vld [vmem:[%s338 + $0x14] sm:$0xf]
        %v412 = vld [vmem:[%s338 + $0x18] sm:$0xf]
        %v413 = vld [vmem:[%s338 + $0x1c] sm:$0xf]
        %v414 = vld [vmem:[%s338 + $0x20] sm:$0xf]
        %v415 = vld [vmem:[%s338 + $0x24] sm:$0xf]
        %v416 = vld [vmem:[%s338 + $0x28] sm:$0xf]
        %v417 = vld [vmem:[%s338 + $0x2c] sm:$0xf]
        %v418 = vld [vmem:[%s338 + $0x30] sm:$0xf]
        %v419 = vld [vmem:[%s338 + $0x34] sm:$0xf]
        %v420 = vld [vmem:[%s338 + $0x38] sm:$0xf]
        %v421 = vld [vmem:[%s338 + $0x3c] sm:$0xf]
        %v422 = vld [vmem:[%s384] sm:$0x1]
        %v424 = vlaneseq
        %v425 = vshrl.u32 %v424, 7
        %v426 = vsub.s32 0, %v425
        %v427 = vrot.slane %v422, %v426
        %v431 = vunpack.c.l.b16 %v404
        %v432 = vunpack.c.l.b16 %v405
        %v433 = vpack.c.b16 %v432, %v431
        %v451 = vunpack.c.l.b16 %v406
        %v452 = vunpack.c.l.b16 %v407
        %v453 = vunpack.c.l.b16 %v408
        %v454 = vunpack.c.l.b16 %v409
        %v455 = vunpack.c.l.b16 %v410
        %v456 = vunpack.c.l.b16 %v411
        %v457 = vunpack.c.l.b16 %v412
        %v458 = vunpack.c.l.b16 %v413
        %v459 = vunpack.c.l.b16 %v414
        %v460 = vunpack.c.l.b16 %v415
        %v461 = vunpack.c.l.b16 %v416
        %v462 = vunpack.c.l.b16 %v417
        %v463 = vunpack.c.l.b16 %v418
        %v464 = vunpack.c.l.b16 %v419
        %v465 = vunpack.c.l.b16 %v420
        %v466 = vunpack.c.l.b16 %v421
        %v467 = vpack.c.b16 %v452, %v451
        %v468 = vpack.c.b16 %v454, %v453
        %v469 = vpack.c.b16 %v456, %v455
        %v470 = vpack.c.b16 %v458, %v457
        %v471 = vpack.c.b16 %v460, %v459
        %v472 = vpack.c.b16 %v462, %v461
        %v473 = vpack.c.b16 %v464, %v463
        %v474 = vpack.c.b16 %v466, %v465
        %483 = vmatprep.subr.bf16.mxu0 0
        %484 = vmatpush1.bf16.msra.mxu0 %v467
        %485 = vmatprep.subr.bf16.mxu0 0
        %486 = vmatpush1.bf16.msra.mxu0 %v468
        %487 = vmatprep.subr.bf16.mxu0 0
        %488 = vmatpush1.bf16.msra.mxu0 %v469
        %489 = vmatprep.subr.bf16.mxu0 0
        %490 = vmatpush1.bf16.msra.mxu0 %v470
        %491 = vmatprep.subr.bf16.mxu0 0
        %492 = vmatpush1.bf16.msra.mxu0 %v471
        %493 = vmatprep.subr.bf16.mxu0 0
        %494 = vmatpush1.bf16.msra.mxu0 %v472
        %495 = vmatprep.subr.bf16.mxu0 0
        %496 = vmatpush1.bf16.msra.mxu0 %v473
        %497 = vmatprep.subr.bf16.mxu0 0
        %498 = vmatpush1.bf16.msra.mxu0 %v474
        %499 = vmatprep.subr.bf16.mxu0 0
        %500 = vmatpush1.bf16.msra.mxu0 0
        %501 = vmatprep.subr.bf16.mxu0 0
        %502 = vmatpush1.bf16.msra.mxu0 0
        %503 = vmatprep.subr.bf16.mxu0 0
        %504 = vmatpush1.bf16.msra.mxu0 0
        %505 = vmatprep.subr.bf16.mxu0 0
        %506 = vmatpush1.bf16.msra.mxu0 0
        %507 = vmatprep.subr.bf16.mxu0 0
        %508 = vmatpush1.bf16.msra.mxu0 0
        %509 = vmatprep.subr.bf16.mxu0 0
        %510 = vmatpush1.bf16.msra.mxu0 0
        %511 = vmatprep.subr.bf16.mxu0 0
        %512 = vmatpush1.bf16.msra.mxu0 0
        %513 = vmatprep.subr.bf16.mxu0 0
        %514 = vmatpush1.bf16.msra.mxu0 0
        %515 = vmatprep.mubr.bf16.mxu0 0
        %516 = vmatmul.mubr.bf16.gmra.mrb[0].mxu0 %v433
        %v517 = vpop.f32.mrb[0].mxu0
        %v518 = vadd.f32 %v427, %v517
        %v519 = vpop.f32.mrb[0].mxu0
        %v520 = vpop.f32.mrb[0].mxu0
        %v521 = vadd.f32 %v427, %v520
        %v522 = vpop.f32.mrb[0].mxu0
        %523 = vdwg.mxu0
        %v524 = vmax.f32 %v518, 0.0
        %v525 = vmax.f32 %v521, 0.0
        %v526 = vld [vmem:[#allocation2] sm:$0xff]
        %v527 = vld [vmem:[#allocation2 + $0x8] sm:$0xff]
        %v528 = vpack.c.bf16 %v525, %v524
        %v529 = vld [vmem:[%s389] sm:$0xf]
        %v530 = vld [vmem:[%s389 + $0x4] sm:$0xf]
        %v531 = vld [vmem:[%s389 + $0x8] sm:$0xf]
        %v532 = vld [vmem:[%s389 + $0xc] sm:$0xf]
        %v533 = vld [vmem:[%s389 + $0x10] sm:$0xf]
        %v534 = vld [vmem:[%s389 + $0x14] sm:$0xf]
        %v535 = vld [vmem:[%s389 + $0x18] sm:$0xf]
        %v536 = vld [vmem:[%s389 + $0x1c] sm:$0xf]
        %v537 = vld [vmem:[%s389 + $0x20] sm:$0xf]
        %v538 = vld [vmem:[%s389 + $0x24] sm:$0xf]
        %v539 = vld [vmem:[%s389 + $0x28] sm:$0xf]
        %v540 = vld [vmem:[%s389 + $0x2c] sm:$0xf]
        %v541 = vld [vmem:[%s389 + $0x30] sm:$0xf]
        %v542 = vld [vmem:[%s389 + $0x34] sm:$0xf]
        %v543 = vld [vmem:[%s389 + $0x38] sm:$0xf]
        %v544 = vld [vmem:[%s389 + $0x3c] sm:$0xf]
        %v561 = vunpack.c.l.b16 %v529
        %v562 = vunpack.c.l.b16 %v530
        %v563 = vunpack.c.l.b16 %v531
        %v564 = vunpack.c.l.b16 %v532
        %v565 = vunpack.c.l.b16 %v533
        %v566 = vunpack.c.l.b16 %v534
        %v567 = vunpack.c.l.b16 %v535
        %v568 = vunpack.c.l.b16 %v536
        %v569 = vunpack.c.l.b16 %v537
        %v570 = vunpack.c.l.b16 %v538
        %v571 = vunpack.c.l.b16 %v539
        %v572 = vunpack.c.l.b16 %v540
        %v573 = vunpack.c.l.b16 %v541
        %v574 = vunpack.c.l.b16 %v542
        %v575 = vunpack.c.l.b16 %v543
        %v576 = vunpack.c.l.b16 %v544
        %v577 = vpack.c.b16 %v562, %v561
        %v578 = vpack.c.b16 %v564, %v563
        %v579 = vpack.c.b16 %v566, %v565
        %v580 = vpack.c.b16 %v568, %v567
        %v581 = vpack.c.b16 %v570, %v569
        %v582 = vpack.c.b16 %v572, %v571
        %v583 = vpack.c.b16 %v574, %v573
        %v584 = vpack.c.b16 %v576, %v575
        %593 = vmatprep.subr.bf16.mxu0 0
        %594 = vmatpush1.bf16.msra.mxu0 %v577
        %595 = vmatprep.subr.bf16.mxu0 0
        %596 = vmatpush1.bf16.msra.mxu0 %v578
        %597 = vmatprep.subr.bf16.mxu0 0
        %598 = vmatpush1.bf16.msra.mxu0 %v579
        %599 = vmatprep.subr.bf16.mxu0 0
        %600 = vmatpush1.bf16.msra.mxu0 %v580
        %601 = vmatprep.subr.bf16.mxu0 0
        %602 = vmatpush1.bf16.msra.mxu0 %v581
        %603 = vmatprep.subr.bf16.mxu0 0
        %604 = vmatpush1.bf16.msra.mxu0 %v582
        %605 = vmatprep.subr.bf16.mxu0 0
        %606 = vmatpush1.bf16.msra.mxu0 %v583
        %607 = vmatprep.subr.bf16.mxu0 0
        %608 = vmatpush1.bf16.msra.mxu0 %v584
        %609 = vmatprep.subr.bf16.mxu0 0
        %610 = vmatpush1.bf16.msra.mxu0 0
        %611 = vmatprep.subr.bf16.mxu0 0
        %612 = vmatpush1.bf16.msra.mxu0 0
        %613 = vmatprep.subr.bf16.mxu0 0
        %614 = vmatpush1.bf16.msra.mxu0 0
        %615 = vmatprep.subr.bf16.mxu0 0
        %616 = vmatpush1.bf16.msra.mxu0 0
        %617 = vmatprep.subr.bf16.mxu0 0
        %618 = vmatpush1.bf16.msra.mxu0 0
        %619 = vmatprep.subr.bf16.mxu0 0
        %620 = vmatpush1.bf16.msra.mxu0 0
        %621 = vmatprep.subr.bf16.mxu0 0
        %622 = vmatpush1.bf16.msra.mxu0 0
        %623 = vmatprep.subr.bf16.mxu0 0
        %624 = vmatpush1.bf16.msra.mxu0 0
        %625 = vmatprep.mubr.bf16.mxu0 0
        %626 = vmatmul.mubr.bf16.gmra.mrb[0].mxu0 %v528
        %v627 = vpop.f32.mrb[0].mxu0
        %v628 = vadd.f32 0.0, %v627
        %v629 = vpop.f32.mrb[0].mxu0
        %v630 = vpop.f32.mrb[0].mxu0
        %v631 = vadd.f32 0.0, %v630
        %v632 = vpop.f32.mrb[0].mxu0
        %633 = vdwg.mxu0
        %v634 = vadd.f32 %v526, %v628
        %v635 = vadd.f32 %v527, %v631
        %636 = vst [vmem:[#allocation2] sm:$0xff] %v634
        %637 = vst [vmem:[#allocation2 + $0x8] sm:$0xff] %v635
        %p638 = scmp.eq.s32.totalorder %s21, 1
        // Predicated region
        $region86: #{feed_forward.1} parent=76 // pred_check
          %p639 = pneg %p638
        $region87: #{feed_forward.1} parent=76 // pred_check_branch
          %641 = sbr.rel (%p639) target = $region89
        $region88: #{feed_forward.1} parent=76 // pred_region
          %v642 = vld [vmem:[#allocation2] sm:$0xff]
          %v643 = vld [vmem:[#allocation2 + $0x8] sm:$0xff]
          %v644 = vld [vmem:[%s4] sm:$0x1]
          %v646 = vlaneseq
          %v647 = vshrl.u32 %v646, 7
          %v648 = vsub.s32 0, %v647
          %v649 = vrot.slane %v644, %v648
          %v651 = vadd.f32 %v642, %v649
          %v652 = vadd.f32 %v643, %v649
          %653 = vst [vmem:[%s395] sm:$0xff] %v651
          %654 = vst [vmem:[%s395 + $0x8] sm:$0xff] %v652
        $region89: #{feed_forward.1} parent=76 // pred_fallthru
          _
        %s655 = smul.u32 2, %s20
        %p656 = scmp.lt.s32.totalorder %s655, 1
        %s657 = scalar_select %p656, %s655, 1
        %s658 = smul.addr %s657, 8
        %s659 = scalar_lea.vmem %s5, %s658
        // Predicated region
        $region90: #{feed_forward.1} parent=76 // pred_check
          %p660 = pneg %p171
        $region91: #{feed_forward.1} parent=76 // pred_check_branch
          %662 = sbr.rel (%p660) target = $region93
        $region92: #{feed_forward.1} parent=76 // pred_region
          %s663 = smul.u32 2, %s20
        $region93: #{feed_forward.1} parent=76 // pred_fallthru
          _
        // Predicated region
        $region94: #{feed_forward.1} parent=76 // pred_check
          %p664 = pneg %p171
        $region95: #{feed_forward.1} parent=76 // pred_check_branch
          %666 = sbr.rel (%p664) target = $region97
        $region96: #{feed_forward.1} parent=76 // pred_region
          %s667 = smul.u32 2, %s20
          %p668 = scmp.lt.s32.totalorder %s667, 1
          %s669 = scalar_select %p668, %s667, 1
          %s670 = smul.addr %s669, 8
          %s671 = scalar_lea.vmem %s5, %s670
        $region97: #{feed_forward.1} parent=76 // pred_fallthru
          _
      $region77: #{feed_forward.1} parent=5 // pred_fallthru
        _
      %p672 = scmp.le.s32.totalorder 2, %s11
      // Predicated region
      $region98: #{feed_forward.1} parent=5 // pred_check
        %p673 = pneg %p672
      $region99: #{feed_forward.1} parent=5 // pred_check_branch
        %675 = sbr.rel (%p673) target = $region101
      $region100: #{feed_forward.1} parent=5 // pred_region
        %s676 = ssub.s32 %s11, 2
      $region101: #{feed_forward.1} parent=5 // pred_fallthru
        _
    $region6: #{feed_forward.1} parent=1 // loop_footer
      %s15 = sadd.s32 1, %s11
    $region7: #{feed_forward.1} parent=1 // loop_footer_branch
      %10 = sbr.rel target = $region3
    $region8: #{feed_forward.1} parent=1 // loop_exit
      _

</llo_original>
